<compile_context>
chip_gen: v5e
topology: v5e:2x2
jax: 0.10.0
libtpu: 0.0.40
codegen_flags: <defaults>
</compile_context>

<pallas_src>
import jax
import jax.numpy as jnp
from jax.experimental import pallas as pl
from jax.experimental.pallas import tpu as pltpu


def _embedding_loss_kernel(d_ref, w_ref, out_ref, acc_ref):
    # d_ref:   (TT, F)   bf16 framed difference tile (batch b, time-tile t)
    # w_ref:   (F, E)    bf16 projection weight
    # out_ref: (8, 128)  f32 lane-dense per-batch output block
    # acc_ref: (1, 1)    f32 running sum of squares for this batch
    t = pl.program_id(1)

    @pl.when(t == 0)
    def _():
        acc_ref[...] = jnp.zeros_like(acc_ref)

    # Single MXU matmul on the framed difference (linearity of the projection).
    emb_diff = jnp.dot(d_ref[...], w_ref[...],
                       preferred_element_type=jnp.float32)     # (TT, E) f32
    acc_ref[...] += jnp.sum(emb_diff * emb_diff)                # scalar broadcast add

    @pl.when(t == pl.num_programs(1) - 1)
    def _():
        dist = jnp.sqrt(acc_ref[...])                           # (1, 1)
        out_ref[...] = jnp.broadcast_to(dist, out_ref.shape)    # lane-dense store


def _pick_t_tile(T, max_tile=512):
    """Whole clip if small; else the largest multiple-of-8 divisor of T <= max_tile."""
    if T <= max_tile:
        return T
    best = None
    for d in range(8, max_tile + 1, 8):
        if T % d == 0:
            best = d
    return best if best is not None else T


def embedding_loss(x, x_target, w, *, frame_size, matmul_dtype=jnp.bfloat16):
    """x, x_target: (B, 1, S) float32; w: (F, E) float32. Returns scalar f32."""
    assert x.ndim == 3 and x_target.ndim == 3
    assert x.shape[1] == 1 and x_target.shape[1] == 1
    B, _, S = x.shape
    F, E = w.shape
    assert frame_size == F
    assert S % F == 0
    T = S // F
    TT = _pick_t_tile(T)
    NT = T // TT

    # Glue (preproc_audio is the identity here): squeeze the channel, take the
    # audio difference once (one input stream instead of two), frame it, and
    # cast the matmul operands to bf16 (accumulation stays f32 in the kernel).
    d = (x_target[:, 0, :] - x[:, 0, :]).reshape(B, T, F).astype(matmul_dtype)
    wm = w.astype(matmul_dtype)

    out = pl.pallas_call(
        _embedding_loss_kernel,
        out_shape=jax.ShapeDtypeStruct((B, 8, 128), jnp.float32),
        grid_spec=pltpu.PrefetchScalarGridSpec(
            num_scalar_prefetch=0,
            grid=(B, NT),
            in_specs=[
                pl.BlockSpec((pl.Squeezed(), TT, F), lambda b, t: (b, t, 0)),
                pl.BlockSpec((F, E), lambda b, t: (0, 0)),
            ],
            out_specs=pl.BlockSpec((pl.Squeezed(), 8, 128), lambda b, t: (b, 0, 0)),
            scratch_shapes=[pltpu.VMEM((1, 1), jnp.float32)],
        ),
        compiler_params=pltpu.CompilerParams(
            dimension_semantics=("parallel", "arbitrary"),
        ),
    )(d, wm)

    dist = out[:, 0, 0]          # per-batch ||emb(x_target) - emb(x)||_2
    return jnp.mean(dist)


def embedding_loss_ref(x, x_target, w, *, frame_size):
    """Pure-JAX reference mirroring the PyTorch forward (f32 throughout)."""
    B, _, S = x.shape
    F, E = w.shape
    T = S // F
    xf = x[:, 0, :].reshape(B, T, F)
    xtf = x_target[:, 0, :].reshape(B, T, F)
    emb_x = jnp.einsum("btf,fe->bte", xf, w)
    emb_t = jnp.einsum("btf,fe->bte", xtf, w)
    diff = emb_t - emb_x
    dist = jnp.sqrt(jnp.sum(diff * diff, axis=(-2, -1)))
    return jnp.mean(dist)


if __name__ == "__main__":
    B = 2          # batch
    F = 128        # frame size (lane axis)
    T = 16         # frames per clip
    E = 128        # embedding dim
    S = T * F      # n_samples == model_n_samples -> preproc is identity

    key = jax.random.PRNGKey(0)
    kx, kt, kw = jax.random.split(key, 3)
    x = jax.random.normal(kx, (B, 1, S), dtype=jnp.float32)
    x_target = jax.random.normal(kt, (B, 1, S), dtype=jnp.float32)
    # Deterministic "embedding model" weight (the concrete get_embedding).
    w = jax.random.normal(kw, (F, E), dtype=jnp.float32) * 0.05

    loss = embedding_loss(x, x_target, w, frame_size=F)
    loss = jax.block_until_ready(loss)

    ref = embedding_loss_ref(x, x_target, w, frame_size=F)
    # bf16 matmul operands (f32 accumulation) -> slightly looser tolerance.
    assert jnp.allclose(loss, ref, rtol=2e-2, atol=2e-2), (loss, ref)

    # TODO(synk): resample (torchaudio) path skipped since model_sr == in_sr,
    # and the repeat/crop preproc is the identity since n_samples == model_n_samples.
    print("KERNEL_OK")
</pallas_src>

<mosaic_0001>
module attributes {stable_mosaic.version = 11 : i64} {
  func.func @_embedding_loss_kernel(%arg0: i32, %arg1: i32, %arg2: memref<1x16x128xbf16, #tpu.memory_space<vmem>>, %arg3: memref<128x128xbf16, #tpu.memory_space<vmem>>, %arg4: memref<1x8x128xf32, #tpu.memory_space<vmem>>, %arg5: memref<1x1xf32, #tpu.memory_space<vmem>>) attributes {dimension_semantics = [#tpu.dimension_semantics<parallel>, #tpu.dimension_semantics<arbitrary>], iteration_bounds = array<i64: 2, 1>, scalar_prefetch = 0 : i64, scratch_operands = 1 : i64, tpu.core_type = #tpu.core_type<tc>, window_params = [{transform_indices = @transform_0, window_bounds = array<i64: 1, 16, 128>}, {pipeline_mode = #tpu.pipeline_mode<synchronous>, transform_indices = @transform_1, window_bounds = array<i64: 128, 128>}, {transform_indices = @transform_2, window_bounds = array<i64: 1, 8, 128>}]} {
    %c0_i32 = arith.constant 0 : i32
    %0 = arith.cmpi eq, %arg1, %c0_i32 : i32
    %1 = arith.extui %0 : i1 to i32
    %c0_i32_0 = arith.constant 0 : i32
    %2 = arith.cmpi ne, %1, %c0_i32_0 : i32
    scf.if %2 {
      %cst_12 = arith.constant 0.000000e+00 : f32
      %19 = vector.broadcast %cst_12 : f32 to vector<1x1xf32>
      %c0_13 = arith.constant 0 : index
      %c0_14 = arith.constant 0 : index
      %20 = vector.load %arg5[%c0_13, %c0_14] : memref<1x1xf32, #tpu.memory_space<vmem>>, vector<1x1xf32>
      tpu.vector_store %arg5[%c0_13, %c0_14], %19 {strides = array<i32>} : memref<1x1xf32, #tpu.memory_space<vmem>>, vector<1x1xf32>,
    } else {
    }
    %c0 = arith.constant 0 : index
    %c0_1 = arith.constant 0 : index
    %c0_2 = arith.constant 0 : index
    %3 = vector.load %arg2[%c0, %c0_1, %c0_2] : memref<1x16x128xbf16, #tpu.memory_space<vmem>>, vector<1x16x128xbf16>
    %4 = vector.shape_cast %3 : vector<1x16x128xbf16> to vector<16x128xbf16>
    %c0_3 = arith.constant 0 : index
    %c0_4 = arith.constant 0 : index
    %5 = vector.load %arg3[%c0_3, %c0_4] : memref<128x128xbf16, #tpu.memory_space<vmem>>, vector<128x128xbf16>
    %cst = arith.constant dense<0.000000e+00> : vector<16x128xf32>
    %6 = tpu.matmul %4, %5, %cst {dimension_numbers = #tpu.dot_dimension_numbers<[1], [0], [0], [1], [0, 0, 1, 1], [], []>} : vector<16x128xbf16>, vector<128x128xbf16>, vector<16x128xf32> -> vector<16x128xf32>
    %c0_5 = arith.constant 0 : index
    %c0_6 = arith.constant 0 : index
    %7 = vector.load %arg5[%c0_5, %c0_6] : memref<1x1xf32, #tpu.memory_space<vmem>>, vector<1x1xf32>
    %8 = arith.mulf %6, %6 : vector<16x128xf32>
    %9 = vector.shape_cast %8 : vector<16x128xf32> to vector<1x16x128xf32>
    %cst_7 = arith.constant dense<0.000000e+00> : vector<1xf32>
    %10 = vector.multi_reduction <add>, %9, %cst_7 [1, 2] : vector<1x16x128xf32> to vector<1xf32>
    %11 = vector.shape_cast %10 : vector<1xf32> to vector<1x1x1xf32>
    %12 = vector.extract %11[0, 0, 0] : f32 from vector<1x1x1xf32>
    %13 = vector.broadcast %12 : f32 to vector<1x1xf32>
    %14 = arith.addf %7, %13 : vector<1x1xf32>
    %c0_8 = arith.constant 0 : index
    %c0_9 = arith.constant 0 : index
    %15 = vector.load %arg5[%c0_8, %c0_9] : memref<1x1xf32, #tpu.memory_space<vmem>>, vector<1x1xf32>
    tpu.vector_store %arg5[%c0_8, %c0_9], %14 {strides = array<i32>} : memref<1x1xf32, #tpu.memory_space<vmem>>, vector<1x1xf32>,
    %c0_i32_10 = arith.constant 0 : i32
    %16 = arith.cmpi eq, %arg1, %c0_i32_10 : i32
    %17 = arith.extui %16 : i1 to i32
    %c0_i32_11 = arith.constant 0 : i32
    %18 = arith.cmpi ne, %17, %c0_i32_11 : i32
    scf.if %18 {
      %c0_12 = arith.constant 0 : index
      %c0_13 = arith.constant 0 : index
      %19 = vector.load %arg5[%c0_12, %c0_13] : memref<1x1xf32, #tpu.memory_space<vmem>>, vector<1x1xf32>
      %20 = math.sqrt %19 : vector<1x1xf32>
      %21 = vector.shape_cast %20 : vector<1x1xf32> to vector<1x1xf32>
      %22 = vector.broadcast %21 : vector<1x1xf32> to vector<8x128xf32>
      %c0_14 = arith.constant 0 : index
      %c0_15 = arith.constant 0 : index
      %c0_16 = arith.constant 0 : index
      %23 = vector.load %arg4[%c0_14, %c0_15, %c0_16] : memref<1x8x128xf32, #tpu.memory_space<vmem>>, vector<1x8x128xf32>
      %24 = vector.shape_cast %23 : vector<1x8x128xf32> to vector<8x128xf32>
      %25 = vector.shape_cast %22 : vector<8x128xf32> to vector<1x8x128xf32>
      tpu.vector_store %arg4[%c0_14, %c0_15, %c0_16], %25 {strides = array<i32>} : memref<1x8x128xf32, #tpu.memory_space<vmem>>, vector<1x8x128xf32>,
    } else {
    }
    return
  }
  func.func @transform_0(%arg0: i32, %arg1: i32) -> (i32, i32, i32) {
    %c0_i32 = arith.constant 0 : i32
    %c0_i32_0 = arith.constant 0 : i32
    return %arg0, %arg1, %c0_i32 : i32, i32, i32
  }
  func.func @transform_1(%arg0: i32, %arg1: i32) -> (i32, i32) {
    %c0_i32 = arith.constant 0 : i32
    %c0_i32_0 = arith.constant 0 : i32
    %c0_i32_1 = arith.constant 0 : i32
    return %c0_i32, %c0_i32_0 : i32, i32
  }
  func.func @transform_2(%arg0: i32, %arg1: i32) -> (i32, i32, i32) {
    %c0_i32 = arith.constant 0 : i32
    %c0_i32_0 = arith.constant 0 : i32
    %c0_i32_1 = arith.constant 0 : i32
    return %arg0, %c0_i32, %c0_i32_0 : i32, i32, i32
  }
}

</mosaic_0001>

<llo_original>
// kernel: tpu_custom_call.1
$region0: #{tpu_custom_call.1}
  #allocation0 [shape = 'u32[]', space=smem, size = 0x4, offset = 0x4, fixed_abs, tag = 'smem constant byte address 0x4 - core index']
  #allocation1 [shape = 'u32[72,128]{1,0:T(1,128)}', space=vmem, size = 0x9000, scoped, tag = 'internal scratch']
  #allocation2 [shape = 'f32[1,1]{1,0:T(1,128)}', space=vmem, size = 0x200, scoped, tag = 'scratch operand']
  %s0 = inlined_call_operand.hbm [shape: bf16[2,16,128], index: 0, kind: input, shape index: {}]
  %s1 = inlined_call_operand.hbm [shape: bf16[128,128], index: 1, kind: input, shape index: {}]
  %s2 = inlined_call_operand.hbm [shape: f32[2,8,128], index: 2, kind: output, shape index: {}]
  %s3 = sld [smem:[#allocation0]]
  $region57: #{tpu_custom_call.1} parent=0
    _
  %s5 = ssub.s32 1, %s3
  %s6 = scalar_select 0, %s5, %s3
  $region1: #{tpu_custom_call.1} parent=0
    #allocation3 [shape = 'u8[8192]{0}', space=vmem, size = 0x2000, scoped, tag = 'input window, operand 0']
    #allocation4 [shape = 's32[2]{0}', space=sflag, size = 0x8, scoped, tag = 'scoped memory for tpu_custom_call.1']
    #allocation5 [shape = 's32[2]{0}', space=sflag, size = 0x8, scoped, tag = 'scoped memory for tpu_custom_call.1']
    #allocation6 [shape = 'u8[32768]{0}', space=vmem, size = 0x8000, scoped, tag = 'input window, operand 1, single buffered']
    #allocation7 [shape = 's32[1]{0}', space=sflag, size = 0x4, scoped, tag = 'scoped memory for tpu_custom_call.1']
    #allocation8 [shape = 'u8[8192]{0}', space=vmem, size = 0x2000, scoped, tag = 'output window, operand 0']
    %7 = vsyncpa [#allocation4], 0
    %s8 = scalar_lea.sflag [#allocation4], 1
    %9 = vsyncpa %s8, 0
    %10 = vsyncpa [#allocation7], 0
    %11 = vsyncpa [#allocation5], 0
    %s12 = scalar_lea.sflag [#allocation5], 1
    %13 = vsyncpa %s12, 0
    loop: start=0, step=1, limit=4
    $region2: #{tpu_custom_call.1} parent=1 // loop_pre_header
      _
    $region3: #{tpu_custom_call.1} parent=1 // loop_header
      %s15 = sphi 0, %s19
      %p16 = scmp.ge.s32.totalorder %s15, 4
      %s22 = sphi 0, %s34
      %s23 = sphi 0, %s30
      %s24 = sphi 0, %s22
      %s25 = sphi 0, %s23
      %s26 = sphi 0, %s24
      %s27 = sphi 0, %s25
      %s39 = sphi 0, %s41
      %s42 = sphi 0, %s39
      %s43 = sphi 0, %s42
      %s59 = sphi 0, %s43
      %s63 = sphi 0, %s63
      %s65 = sphi 0, %s63
      %s66 = sphi 0, %s65
      %s80 = sphi 0, %s66
      %s86 = sphi 0, %s88
      %s89 = sphi 0, %s86
      %s90 = sphi 0, %s89
      %s106 = sphi 0, %s90
    $region4: #{tpu_custom_call.1} parent=1 // loop_header_branch
      %18 = sbr.rel (%p16) target = $region8
    $region5: #{tpu_custom_call.1} parent=1 // loop_body
      %s20 = ssub.s32 %s15, 1
      %s21 = ssub.s32 %s15, 2
      %s28 = sadd.s32 1, %s23
      %p29 = scmp.ge.s32.totalorder %s28, 1
      %s30 = scalar_select %p29, 0, %s28
      %s31 = sadd.s32 1, %s22
      %s32 = scalar_select %p29, %s31, %s22
      %p33 = scmp.ge.s32.totalorder %s32, 2
      %s34 = scalar_select %p33, 0, %s32
      %s35 = ssub.s32 %s22, %s34
      %s36 = ssub.s32 %s23, %s30
      %s37 = sor.u32 %s35, %s36
      %p38 = scmp.eq.s32.totalorder %s37, 0
      %s40 = sadd.s32 %s39, 1
      %s41 = scalar_select %p38, %s39, %s40
      %p44 = pneg %p38
      %p45 = scmp.eq.s32.totalorder %s15, 1
      %p46 = por %p44, %p45
      %p47 = scmp.ne.s32.totalorder %s39, %s42
      %p48 = scmp.eq.s32.totalorder %s15, 0
      %p49 = por %p47, %p48
      %p50 = scmp.ne.s32.totalorder %s39, %s42
      %p51 = scmp.eq.s32.totalorder %s20, 1
      %p52 = por %p50, %p51
      %p53 = scmp.ne.s32.totalorder %s42, %s43
      %p54 = scmp.eq.s32.totalorder %s20, 0
      %p55 = por %p53, %p54
      %p56 = scmp.ne.s32.totalorder %s42, %s43
      %p57 = scmp.eq.s32.totalorder %s21, 1
      %p58 = por %p56, %p57
      %p60 = scmp.ne.s32.totalorder %s43, %s59
      %p61 = scmp.eq.s32.totalorder %s21, 0
      %p62 = por %p60, %p61
      %s64 = sadd.s32 %s63, 1
      %p67 = scmp.eq.s32.totalorder %s15, 1
      %p68 = scmp.ne.s32.totalorder %s63, %s65
      %p69 = scmp.eq.s32.totalorder %s15, 0
      %p70 = por %p68, %p69
      %p71 = scmp.ne.s32.totalorder %s63, %s65
      %p72 = scmp.eq.s32.totalorder %s20, 1
      %p73 = por %p71, %p72
      %p74 = scmp.ne.s32.totalorder %s65, %s66
      %p75 = scmp.eq.s32.totalorder %s20, 0
      %p76 = por %p74, %p75
      %p77 = scmp.ne.s32.totalorder %s65, %s66
      %p78 = scmp.eq.s32.totalorder %s21, 1
      %p79 = por %p77, %p78
      %p81 = scmp.ne.s32.totalorder %s66, %s80
      %p82 = scmp.eq.s32.totalorder %s21, 0
      %p83 = por %p81, %p82
      %s84 = ssub.s32 %s22, %s34
      %p85 = scmp.eq.s32.totalorder %s84, 0
      %s87 = sadd.s32 %s86, 1
      %s88 = scalar_select %p85, %s86, %s87
      %p91 = pneg %p85
      %p92 = scmp.eq.s32.totalorder %s15, 1
      %p93 = por %p91, %p92
      %p94 = scmp.ne.s32.totalorder %s86, %s89
      %p95 = scmp.eq.s32.totalorder %s15, 0
      %p96 = por %p94, %p95
      %p97 = scmp.ne.s32.totalorder %s86, %s89
      %p98 = scmp.eq.s32.totalorder %s20, 1
      %p99 = por %p97, %p98
      %p100 = scmp.ne.s32.totalorder %s89, %s90
      %p101 = scmp.eq.s32.totalorder %s20, 0
      %p102 = por %p100, %p101
      %p103 = scmp.ne.s32.totalorder %s89, %s90
      %p104 = scmp.eq.s32.totalorder %s21, 1
      %p105 = por %p103, %p104
      %p107 = scmp.ne.s32.totalorder %s90, %s106
      %p108 = scmp.eq.s32.totalorder %s21, 0
      %p109 = por %p107, %p108
      %p110 = scmp.le.s32.totalorder 1, %s15
      %p111 = scmp.lt.s32.totalorder %s15, 3
      %p112 = pnand %p110, %p111
      %p113 = pneg %p112
      // Predicated region
      $region9: #{tpu_custom_call.1} parent=5 // pred_check
        _
      $region10: #{tpu_custom_call.1} parent=5 // pred_check_branch
        %115 = sbr.rel (%p112) target = $region12
      $region11: #{tpu_custom_call.1} parent=5 // pred_region
        %s116 = ssub.s32 %s15, 1
        // Predicated region
        $region13: #{tpu_custom_call.1} parent=11 // pred_check
          %p117 = pneg %p76
        $region14: #{tpu_custom_call.1} parent=11 // pred_check_branch
          %119 = sbr.rel (%p117) target = $region16
        $region15: #{tpu_custom_call.1} parent=11 // pred_region
          %121 = vsyncadd [#allocation7], 0
          %s122 = sshll.u32 %s1, 4
          %s123 = int_to_ptr.hbm [resolvable:$true] %s122
          %s124 = sshll.u32 [#allocation6], 4
          %s125 = int_to_ptr.vmem [resolvable:$true] %s124
          %130 = dma.hbm_to_vmem [thread:$0]  %s123, 1024, %s125, [#allocation7], 64, 64, 4
        $region16: #{tpu_custom_call.1} parent=11 // pred_fallthru
          _
      $region12: #{tpu_custom_call.1} parent=5 // pred_fallthru
        _
      %p131 = scmp.lt.s32.totalorder %s15, 2
      // Predicated region
      $region17: #{tpu_custom_call.1} parent=5 // pred_check
        %p132 = pneg %p131
      $region18: #{tpu_custom_call.1} parent=5 // pred_check_branch
        %134 = sbr.rel (%p132) target = $region20
      $region19: #{tpu_custom_call.1} parent=5 // pred_region
        // Predicated region
        $region21: #{tpu_custom_call.1} parent=19 // pred_check
          %p135 = pneg %p49
        $region22: #{tpu_custom_call.1} parent=19 // pred_check_branch
          %137 = sbr.rel (%p135) target = $region24
        $region23: #{tpu_custom_call.1} parent=19 // pred_region
          %s138 = sand.u32 %s39, 1
          %s139 = scalar_lea.sflag [#allocation4], %s138
          %s140 = sand.u32 %s39, 1
          %s141 = smul.addr %s140, 8
          %s142 = scalar_lea.vmem [#allocation3], %s141
          %s143 = smul.u32 2, %s23
          %145 = vsyncadd %s139, 0
          %s146 = smul.addr %s22, 2
          %s147 = sadd.s32 %s143, %s146
          %s148 = smul.addr %s147, 4
          %s149 = scalar_lea.hbm %s0, %s148
          %s150 = sshll.u32 %s149, 4
          %s151 = int_to_ptr.hbm [resolvable:$true] %s150
          %s152 = sshll.u32 %s142, 4
          %s153 = int_to_ptr.vmem [resolvable:$true] %s152
          %158 = dma.hbm_to_vmem [thread:$0]  %s151, 128, %s153, %s139, 64, 64, 4
        $region24: #{tpu_custom_call.1} parent=19 // pred_fallthru
          _
      $region20: #{tpu_custom_call.1} parent=5 // pred_fallthru
        _
      %p159 = scmp.le.s32.totalorder 1, %s15
      %p160 = scmp.lt.s32.totalorder %s15, 3
      %p161 = pnand %p159, %p160
      %p162 = pneg %p161
      // Predicated region
      $region25: #{tpu_custom_call.1} parent=5 // pred_check
        _
      $region26: #{tpu_custom_call.1} parent=5 // pred_check_branch
        %164 = sbr.rel (%p161) target = $region28
      $region27: #{tpu_custom_call.1} parent=5 // pred_region
        %s165 = ssub.s32 %s15, 1
        %s166 = sand.u32 %s42, 1
        %s167 = scalar_lea.sflag [#allocation4], %s166
        %s168 = sand.u32 %s42, 1
        %s169 = smul.addr %s168, 8
        %s170 = scalar_lea.vmem [#allocation3], %s169
        // Predicated region
        $region29: #{tpu_custom_call.1} parent=27 // pred_check
          %p171 = pneg %p55
        $region30: #{tpu_custom_call.1} parent=27 // pred_check_branch
          %173 = sbr.rel (%p171) target = $region32
        $region31: #{tpu_custom_call.1} parent=27 // pred_region
          %175 = dma.done %s167, 128
        $region32: #{tpu_custom_call.1} parent=27 // pred_fallthru
          _
        // Predicated region
        $region33: #{tpu_custom_call.1} parent=27 // pred_check
          %p176 = pneg %p76
        $region34: #{tpu_custom_call.1} parent=27 // pred_check_branch
          %178 = sbr.rel (%p176) target = $region36
        $region35: #{tpu_custom_call.1} parent=27 // pred_region
          %180 = dma.done [#allocation7], 1024
        $region36: #{tpu_custom_call.1} parent=27 // pred_fallthru
          _
        %s181 = sand.u32 %s42, 1
        %s182 = scalar_lea.sflag [#allocation4], %s181
        %s183 = sand.u32 %s42, 1
        %s184 = smul.addr %s183, 8
        %s185 = scalar_lea.vmem [#allocation3], %s184
        %p186 = pneg %p55
        %p187 = pneg %p52
        %p188 = pneg %p76
        %p189 = pneg %p73
        %p190 = pneg %p102
        %p191 = pneg %p99
        %s192 = sand.u32 %s89, 1
        %s193 = scalar_lea.sflag [#allocation5], %s192
        %s194 = sand.u32 %s89, 1
        %s195 = smul.addr %s194, 8
        %s196 = scalar_lea.vmem [#allocation8], %s195
        %s197 = smul.u32 2, %s25
        %p198 = scmp.eq.s32.totalorder %s25, 0
        // Predicated region
        $region37: #{tpu_custom_call.1} parent=27 // pred_check
          %p199 = pneg %p198
        $region38: #{tpu_custom_call.1} parent=27 // pred_check_branch
          %201 = sbr.rel (%p199) target = $region40
        $region39: #{tpu_custom_call.1} parent=27 // pred_region
          %vm202 = vcmask 0
          %203 = vst.msk [vmem:[#allocation2] sm:$0x1] %vm202, 0.0
        $region40: #{tpu_custom_call.1} parent=27 // pred_fallthru
          _
        %v204 = vld [vmem:[%s170] sm:$0xf]
        %v205 = vld [vmem:[%s170 + $0x4] sm:$0xf]
        %v206 = vld [vmem:[#allocation6] sm:$0xf]
        %v207 = vld [vmem:[#allocation6 + $0x4] sm:$0xf]
        %v208 = vld [vmem:[#allocation6 + $0x8] sm:$0xf]
        %v209 = vld [vmem:[#allocation6 + $0xc] sm:$0xf]
        %v210 = vld [vmem:[#allocation6 + $0x10] sm:$0xf]
        %v211 = vld [vmem:[#allocation6 + $0x14] sm:$0xf]
        %v212 = vld [vmem:[#allocation6 + $0x18] sm:$0xf]
        %v213 = vld [vmem:[#allocation6 + $0x1c] sm:$0xf]
        %v214 = vld [vmem:[#allocation6 + $0x20] sm:$0xf]
        %v215 = vld [vmem:[#allocation6 + $0x24] sm:$0xf]
        %v216 = vld [vmem:[#allocation6 + $0x28] sm:$0xf]
        %v217 = vld [vmem:[#allocation6 + $0x2c] sm:$0xf]
        %v218 = vld [vmem:[#allocation6 + $0x30] sm:$0xf]
        %v219 = vld [vmem:[#allocation6 + $0x34] sm:$0xf]
        %v220 = vld [vmem:[#allocation6 + $0x38] sm:$0xf]
        %v221 = vld [vmem:[#allocation6 + $0x3c] sm:$0xf]
        %v224 = vunpack.c.l.b16 %v204
        %v225 = vunpack.c.l.b16 %v205
        %v226 = vpack.c.b16 %v225, %v224
        %v244 = vunpack.c.l.b16 %v206
        %v245 = vunpack.c.l.b16 %v207
        %v246 = vunpack.c.l.b16 %v208
        %v247 = vunpack.c.l.b16 %v209
        %v248 = vunpack.c.l.b16 %v210
        %v249 = vunpack.c.l.b16 %v211
        %v250 = vunpack.c.l.b16 %v212
        %v251 = vunpack.c.l.b16 %v213
        %v252 = vunpack.c.l.b16 %v214
        %v253 = vunpack.c.l.b16 %v215
        %v254 = vunpack.c.l.b16 %v216
        %v255 = vunpack.c.l.b16 %v217
        %v256 = vunpack.c.l.b16 %v218
        %v257 = vunpack.c.l.b16 %v219
        %v258 = vunpack.c.l.b16 %v220
        %v259 = vunpack.c.l.b16 %v221
        %v260 = vpack.c.b16 %v245, %v244
        %v261 = vpack.c.b16 %v247, %v246
        %v262 = vpack.c.b16 %v249, %v248
        %v263 = vpack.c.b16 %v251, %v250
        %v264 = vpack.c.b16 %v253, %v252
        %v265 = vpack.c.b16 %v255, %v254
        %v266 = vpack.c.b16 %v257, %v256
        %v267 = vpack.c.b16 %v259, %v258
        %276 = vmatpush.bf16.msra.mxu0 %v267
        %277 = vmatpush.bf16.msra.mxu0 %v266
        %278 = vmatpush.bf16.msra.mxu0 %v265
        %279 = vmatpush.bf16.msra.mxu0 %v264
        %280 = vmatpush.bf16.msra.mxu0 %v263
        %281 = vmatpush.bf16.msra.mxu0 %v262
        %282 = vmatpush.bf16.msra.mxu0 %v261
        %283 = vmatpush.bf16.msra.mxu0 %v260
        %284 = vmatmul.bf16.gmra.mxu0 %v226
        %v285 = vpop.f32.mrf.mxu0
        %v286 = vadd.f32 0.0, %v285
        %v287 = vpop.f32.mrf.mxu0
        %v288 = vadd.f32 0.0, %v287
        %289 = vdwg.mxu0
        %v290 = vld [vmem:[#allocation2] sm:$0x1]
        %v291 = vmul.f32 %v286, %v286
        %v292 = vmul.f32 %v288, %v288
        %v293 = vadd.f32 %v291, %v292
        %294 = vadd.xlane.f32.xlu0 %v293
        %v295 = vpop.xlane.xlu0 %294
        %v296 = vrot.slane %v295, 4
        %v297 = vadd.f32 %v295, %v296
        %v298 = vrot.slane %v297, 2
        %v299 = vadd.f32 %v297, %v298
        %v300 = vrot.slane %v299, 1
        %v301 = vadd.f32 %v299, %v300
        %s302 = vtos %v301
        %v303 = vstv %s302
        %v304 = vadd.f32 %v290, %v303
        %vm305 = vcmask 0
        %306 = vst.msk [vmem:[#allocation2] sm:$0x1] %vm305, %v304
        // Predicated region
        $region41: #{tpu_custom_call.1} parent=27 // pred_check
          %p307 = pneg %p198
        $region42: #{tpu_custom_call.1} parent=27 // pred_check_branch
          %309 = sbr.rel (%p307) target = $region44
        $region43: #{tpu_custom_call.1} parent=27 // pred_region
          %v310 = vld [vmem:[#allocation2] sm:$0x1]
          %v311 = vrsqrt.pop %v310
          %v312 = vmul.f32 %v311, %v310
          %v313 = vmul.f32 %v312, %v311
          %v314 = vmul.f32 0.5, %v313
          %v315 = vsub.f32 1.5, %v314
          %v316 = vmul.f32 %v311, %v315
          %v317 = vmul.f32 %v310, %v316
          %vm318 = vcmp.eq.f32.partialorder %v310, inf
          %v319 = vsel %vm318, %v310, %v317
          %vm320 = vcmp.eq.f32.partialorder %v310, 0.0
          %v321 = vand.u32 %v310, 2147483648
          %v322 = vsel %vm320, %v321, %v319
          %v324 = vperm.slane %v322, 0
          %325 = vset.pattern.permute.xlu0 0
          %326 = vperm.xlu0 %325, %v324
          %v327 = vpop.permute.xlu0 %326
          %329 = vst [vmem:[%s196] sm:$0xff] %v327
        $region44: #{tpu_custom_call.1} parent=27 // pred_fallthru
          _
        %s330 = sand.u32 %s89, 1
        %s331 = scalar_lea.sflag [#allocation5], %s330
        %s332 = sand.u32 %s89, 1
        %s333 = smul.addr %s332, 8
        %s334 = scalar_lea.vmem [#allocation8], %s333
        // Predicated region
        $region45: #{tpu_custom_call.1} parent=27 // pred_check
          %p335 = pneg %p99
        $region46: #{tpu_custom_call.1} parent=27 // pred_check_branch
          %337 = sbr.rel (%p335) target = $region48
        $region47: #{tpu_custom_call.1} parent=27 // pred_region
          %339 = vsyncadd %s331, 0
          %s340 = smul.addr %s24, 8
          %s341 = scalar_lea.hbm %s2, %s340
          %s343 = sshll.u32 %s334, 4
          %s344 = int_to_ptr.vmem [resolvable:$true] %s343
          %s345 = sshll.u32 %s341, 4
          %s346 = int_to_ptr.hbm [resolvable:$true] %s345
          %348 = dma.vmem_to_hbm [thread:$0]  %s344, 128, %s346, %s331
        $region48: #{tpu_custom_call.1} parent=27 // pred_fallthru
          _
      $region28: #{tpu_custom_call.1} parent=5 // pred_fallthru
        _
      %p349 = scmp.le.s32.totalorder 2, %s15
      // Predicated region
      $region49: #{tpu_custom_call.1} parent=5 // pred_check
        %p350 = pneg %p349
      $region50: #{tpu_custom_call.1} parent=5 // pred_check_branch
        %352 = sbr.rel (%p350) target = $region52
      $region51: #{tpu_custom_call.1} parent=5 // pred_region
        %s353 = ssub.s32 %s15, 2
        // Predicated region
        $region53: #{tpu_custom_call.1} parent=51 // pred_check
          %p354 = pneg %p105
        $region54: #{tpu_custom_call.1} parent=51 // pred_check_branch
          %356 = sbr.rel (%p354) target = $region56
        $region55: #{tpu_custom_call.1} parent=51 // pred_region
          %s357 = sand.u32 %s90, 1
          %s358 = scalar_lea.sflag [#allocation5], %s357
          %s359 = sand.u32 %s90, 1
          %s360 = smul.addr %s359, 8
          %s361 = scalar_lea.vmem [#allocation8], %s360
          %363 = dma.done %s358, 128
        $region56: #{tpu_custom_call.1} parent=51 // pred_fallthru
          _
      $region52: #{tpu_custom_call.1} parent=5 // pred_fallthru
        _
    $region6: #{tpu_custom_call.1} parent=1 // loop_footer
      %s19 = sadd.s32 1, %s15
    $region7: #{tpu_custom_call.1} parent=1 // loop_footer_branch
      %14 = sbr.rel target = $region3
    $region8: #{tpu_custom_call.1} parent=1 // loop_exit
      _
    %364 = vsyncpa [#allocation4], 1
    %s365 = scalar_lea.sflag [#allocation4], 1
    %366 = vsyncpa %s365, 1
    %367 = vsyncpa [#allocation7], 1
    %368 = vsyncpa [#allocation5], 1
    %s369 = scalar_lea.sflag [#allocation5], 1
    %370 = vsyncpa %s369, 1

</llo_original>
